<compile_context>
chip_gen: v6e
topology: v6e:2x2x1
jax: 0.10.0
libtpu: 0.0.40
codegen_flags: <defaults>
</compile_context>

<pallas_src>
import functools

import jax
import jax.numpy as jnp
from jax.experimental import pallas as pl
from jax.experimental.pallas import tpu as pltpu

_LANE = 128


def _round_up(x, m):
    return ((x + m - 1) // m) * m


def _default_num_shards():
    """1 on single-TC chips (v5e/v6e), 2 on 2-TC v7x."""
    try:
        kind = jax.devices()[0].device_kind.lower()
    except Exception:
        return 1
    return 2 if ("v7" in kind or "7x" in kind) else 1


def _focal_loss_kernel(logits_ref, targets_ref, out_ref, *,
                       alpha, gamma, n_full_rows, rem, nb, tm, steps):
    c = pl.program_id(0)          # shard axis ("parallel": one per TC on v7x)
    i = pl.program_id(1)          # sequential reduction step within the shard

    @pl.when(i == 0)
    def _():
        out_ref[...] = jnp.zeros_like(out_ref)

    # No input pre-masking: garbage in padded/duplicated blocks is finite and
    # gets selected out of `loss` on the boundary path below.
    x = logits_ref[...].astype(jnp.float32)
    t = targets_ref[...].astype(jnp.float32)

    # Stable sigmoid and BCE-with-logits share exp(-|x|).
    # Denominator reciprocal: EUP approx + one Newton step (~f32 accurate).
    e = jnp.exp(-jnp.abs(x))
    d = 1.0 + e
    r = pl.reciprocal(d, approx=True)
    inv = r * (2.0 - d * r)
    p = jnp.where(x >= 0.0, 1.0, e) * inv        # == sigmoid(x)

    # u = 1 - p_t = p + t - 2*p*t ; focal weight with folded alpha constants.
    u = p + t - 2.0 * p * t
    g = float(gamma)
    if g == 0.0:
        w_pow = jnp.ones_like(u)
    elif g == round(g) and 1 <= int(round(g)) <= 8:
        # Integer gamma (default 2.0): repeated VPU multiplies, no pow (exp+log).
        w_pow = u
        for _ in range(int(round(g)) - 1):
            w_pow = w_pow * u
    else:
        w_pow = jnp.power(u, g)
    aw = (1.0 - alpha) + (2.0 * alpha - 1.0) * t

    # BCE with logits: max(x,0) - x*t + log1p(exp(-|x|))
    bce = jnp.maximum(x, 0.0) - x * t + jnp.log1p(e)
    loss = bce * aw * w_pow

    def fold(v):
        # VPU-only fold (tm,128) -> (8,128) into the resident output block.
        return jnp.sum(v.reshape(tm // 8, 8, _LANE), axis=0)

    blk = c * steps + i                 # logical (unclamped) row-block id
    is_edge = blk >= nb - 1             # ragged last block OR clamped duplicate

    @pl.when(jnp.logical_not(is_edge))
    def _():
        # Fast path: interior blocks are fully valid — no mask work at all.
        out_ref[...] += fold(loss)

    @pl.when(is_edge)
    def _():
        # Boundary path only: mask by (row, lane) bounds — no flat element
        # index, so no int32 overflow even for multi-billion-element inputs.
        row0 = blk * tm
        rows = jax.lax.broadcasted_iota(jnp.int32, (tm, _LANE), 0) + row0
        mask = rows < n_full_rows
        if rem:
            lanes = jax.lax.broadcasted_iota(jnp.int32, (tm, _LANE), 1)
            mask = jnp.logical_or(
                mask, jnp.logical_and(rows == n_full_rows, lanes < rem))
        out_ref[...] += fold(jnp.where(mask, loss, 0.0))


def focal_loss(logits, targets, alpha=0.25, gamma=2.0, reduction="mean",
               *, tm_max=8192, num_shards=None):
    """Focal loss for binary classification.

    logits/targets: same shape. targets may be f32/bf16/int — the kernel
    upcasts in VMEM (narrow targets save HBM bandwidth on mem-bound v5e).
    """
    assert logits.shape == targets.shape
    n_total = int(logits.size)
    if reduction not in ("mean", "sum"):
        # TODO(synk): reduction='none' (elementwise loss map output) is not
        # implemented in this reduced-scalar kernel.
        raise NotImplementedError("reduction='none' not implemented in this kernel")

    flat_logits = logits.reshape(-1)
    flat_targets = targets.reshape(-1)
    pad = (-n_total) % _LANE
    if pad:
        # Minimal lane pad only when N % 128 != 0; padded elements are masked
        # exactly inside the kernel's boundary path.
        flat_logits = jnp.pad(flat_logits, (0, pad))
        flat_targets = jnp.pad(flat_targets, (0, pad))
    m_rows = (n_total + pad) // _LANE
    logits2d = flat_logits.reshape(m_rows, _LANE)
    targets2d = flat_targets.reshape(m_rows, _LANE)

    # Large row tile (multiple of 8), capped at what the array actually needs.
    # tm=8192 -> 4 MiB per input block, 16 MiB double-buffered across 2 inputs.
    tm = _round_up(min(tm_max, _round_up(m_rows, 8)), 8)
    nb = pl.cdiv(m_rows, tm)                  # total row blocks
    if num_shards is None:
        num_shards = _default_num_shards()
    num_shards = max(1, min(int(num_shards), nb))
    steps = pl.cdiv(nb, num_shards)           # sequential steps per shard

    kernel = functools.partial(
        _focal_loss_kernel,
        alpha=float(alpha), gamma=float(gamma),
        n_full_rows=n_total // _LANE, rem=n_total % _LANE,
        nb=nb, tm=tm, steps=steps)

    def in_map(c, i):
        # Clamp so the DMA never addresses past the array; the kernel masks the
        # clamped-duplicate / ragged contributions to exactly zero.
        return (jnp.minimum(c * steps + i, nb - 1), 0)

    partials = pl.pallas_call(
        kernel,
        out_shape=jax.ShapeDtypeStruct((num_shards * 8, _LANE), jnp.float32),
        grid_spec=pltpu.PrefetchScalarGridSpec(
            num_scalar_prefetch=0,
            grid=(num_shards, steps),
            in_specs=[
                pl.BlockSpec((tm, _LANE), in_map),
                pl.BlockSpec((tm, _LANE), in_map),
            ],
            # Output block index ignores the reduction axis -> resident
            # accumulator; disjoint per shard for megacore parallelism.
            out_specs=pl.BlockSpec((8, _LANE), lambda c, i: (c, 0)),
        ),
        compiler_params=pltpu.CompilerParams(
            dimension_semantics=("parallel", "arbitrary"),
            vmem_limit_bytes=32 * 1024 * 1024),
    )(logits2d, targets2d)

    loss_sum = jnp.sum(partials)
    if reduction == "mean":
        return loss_sum / n_total
    return loss_sum


def _focal_loss_ref(logits, targets, alpha=0.25, gamma=2.0):
    """Pure-JAX reference mirroring the PyTorch module."""
    x = logits.astype(jnp.float32)
    t = targets.astype(jnp.float32)
    p = jax.nn.sigmoid(x)
    p_t = p * t + (1 - p) * (1 - t)
    focal_w = (alpha * t + (1 - alpha) * (1 - t)) * (1 - p_t) ** gamma
    bce = jnp.maximum(x, 0.0) - x * t + jnp.log1p(jnp.exp(-jnp.abs(x)))
    return jnp.mean(bce * focal_w)


if __name__ == "__main__":
    key = jax.random.PRNGKey(0)
    k1, k2 = jax.random.split(key)
    # Small NCHW-like shape for binary segmentation logits/targets.
    shape = (2, 4, 16, 16)
    logits = jax.random.normal(k1, shape, dtype=jnp.float32) * 2.0
    targets = (jax.random.uniform(k2, shape) > 0.5).astype(jnp.float32)

    out = focal_loss(logits, targets, alpha=0.25, gamma=2.0, reduction="mean")
    out = jax.block_until_ready(out)

    ref = _focal_loss_ref(logits, targets)
    assert jnp.allclose(out, ref, rtol=1e-5, atol=1e-6), (out, ref)
    print("KERNEL_OK")
</pallas_src>

<mosaic_0001>
module attributes {stable_mosaic.version = 11 : i64} {
  func.func @_focal_loss_kernel(%arg0: i32, %arg1: i32, %arg2: memref<16x128xf32, #tpu.memory_space<vmem>>, %arg3: memref<16x128xf32, #tpu.memory_space<vmem>>, %arg4: memref<8x128xf32, #tpu.memory_space<vmem>>) attributes {dimension_semantics = [#tpu.dimension_semantics<parallel>, #tpu.dimension_semantics<arbitrary>], iteration_bounds = array<i64: 1, 1>, scalar_prefetch = 0 : i64, scratch_operands = 0 : i64, tpu.core_type = #tpu.core_type<tc>, window_params = [{transform_indices = @transform_0, window_bounds = array<i64: 16, 128>}, {transform_indices = @transform_1, window_bounds = array<i64: 16, 128>}, {transform_indices = @transform_2, window_bounds = array<i64: 8, 128>}]} {
    %c0_i32 = arith.constant 0 : i32
    %0 = arith.cmpi eq, %arg1, %c0_i32 : i32
    %1 = arith.extui %0 : i1 to i32
    %c0_i32_0 = arith.constant 0 : i32
    %2 = arith.cmpi ne, %1, %c0_i32_0 : i32
    scf.if %2 {
      %cst_15 = arith.constant 0.000000e+00 : f32
      %47 = vector.broadcast %cst_15 : f32 to vector<8x128xf32>
      %c0_16 = arith.constant 0 : index
      %c0_17 = arith.constant 0 : index
      %48 = vector.load %arg4[%c0_16, %c0_17] : memref<8x128xf32, #tpu.memory_space<vmem>>, vector<8x128xf32>
      tpu.vector_store %arg4[%c0_16, %c0_17], %47 {strides = array<i32>} : memref<8x128xf32, #tpu.memory_space<vmem>>, vector<8x128xf32>,
    } else {
    }
    %c0 = arith.constant 0 : index
    %c0_1 = arith.constant 0 : index
    %3 = vector.load %arg2[%c0, %c0_1] : memref<16x128xf32, #tpu.memory_space<vmem>>, vector<16x128xf32>
    %c0_2 = arith.constant 0 : index
    %c0_3 = arith.constant 0 : index
    %4 = vector.load %arg3[%c0_2, %c0_3] : memref<16x128xf32, #tpu.memory_space<vmem>>, vector<16x128xf32>
    %5 = math.absf %3 : vector<16x128xf32>
    %cst = arith.constant 0.000000e+00 : f32
    %6 = vector.broadcast %cst : f32 to vector<16x128xf32>
    %7 = arith.subf %6, %5 : vector<16x128xf32>
    %8 = math.exp %7 : vector<16x128xf32>
    %cst_4 = arith.constant 1.000000e+00 : f32
    %9 = vector.broadcast %cst_4 : f32 to vector<16x128xf32>
    %10 = arith.addf %9, %8 : vector<16x128xf32>
    %11 = tpu.reciprocal %10 {approx = true} : vector<16x128xf32> -> vector<16x128xf32>
    %12 = arith.mulf %10, %11 : vector<16x128xf32>
    %cst_5 = arith.constant 2.000000e+00 : f32
    %13 = vector.broadcast %cst_5 : f32 to vector<16x128xf32>
    %14 = arith.subf %13, %12 : vector<16x128xf32>
    %15 = arith.mulf %11, %14 : vector<16x128xf32>
    %cst_6 = arith.constant 0.000000e+00 : f32
    %16 = vector.broadcast %cst_6 : f32 to vector<16x128xf32>
    %17 = arith.cmpf oge, %3, %16 : vector<16x128xf32>
    %cst_7 = arith.constant 1.000000e+00 : f32
    %18 = vector.broadcast %cst_7 : f32 to vector<16x128xf32>
    %19 = arith.select %17, %18, %8 : vector<16x128xi1>, vector<16x128xf32>
    %20 = arith.mulf %19, %15 : vector<16x128xf32>
    %21 = arith.addf %20, %4 : vector<16x128xf32>
    %cst_8 = arith.constant 2.000000e+00 : f32
    %22 = vector.broadcast %cst_8 : f32 to vector<16x128xf32>
    %23 = arith.mulf %22, %20 : vector<16x128xf32>
    %24 = arith.mulf %23, %4 : vector<16x128xf32>
    %25 = arith.subf %21, %24 : vector<16x128xf32>
    %26 = arith.mulf %25, %25 : vector<16x128xf32>
    %cst_9 = arith.constant -5.000000e-01 : f32
    %27 = vector.broadcast %cst_9 : f32 to vector<16x128xf32>
    %28 = arith.mulf %27, %4 : vector<16x128xf32>
    %cst_10 = arith.constant 7.500000e-01 : f32
    %29 = vector.broadcast %cst_10 : f32 to vector<16x128xf32>
    %30 = arith.addf %29, %28 : vector<16x128xf32>
    %cst_11 = arith.constant 0.000000e+00 : f32
    %31 = vector.broadcast %cst_11 : f32 to vector<16x128xf32>
    %32 = arith.maximumf %3, %31 : vector<16x128xf32>
    %33 = arith.mulf %3, %4 : vector<16x128xf32>
    %34 = arith.subf %32, %33 : vector<16x128xf32>
    %35 = math.log1p %8 : vector<16x128xf32>
    %36 = arith.addf %34, %35 : vector<16x128xf32>
    %37 = arith.mulf %36, %30 : vector<16x128xf32>
    %38 = arith.mulf %37, %26 : vector<16x128xf32>
    %c1_i32 = arith.constant 1 : i32
    %39 = arith.muli %arg0, %c1_i32 : i32
    %40 = arith.addi %39, %arg1 : i32
    %c0_i32_12 = arith.constant 0 : i32
    %41 = arith.cmpi sge, %40, %c0_i32_12 : i32
    %true = arith.constant true
    %42 = arith.xori %41, %true : i1
    %43 = arith.extui %42 : i1 to i32
    %c0_i32_13 = arith.constant 0 : i32
    %44 = arith.cmpi ne, %43, %c0_i32_13 : i32
    scf.if %44 {
      %c0_15 = arith.constant 0 : index
      %c0_16 = arith.constant 0 : index
      %47 = vector.load %arg4[%c0_15, %c0_16] : memref<8x128xf32, #tpu.memory_space<vmem>>, vector<8x128xf32>
      %48 = vector.shape_cast %38 : vector<16x128xf32> to vector<2x8x128xf32>
      %cst_17 = arith.constant dense<0.000000e+00> : vector<8x128xf32>
      %49 = vector.multi_reduction <add>, %48, %cst_17 [0] : vector<2x8x128xf32> to vector<8x128xf32>
      %50 = arith.addf %47, %49 : vector<8x128xf32>
      %c0_18 = arith.constant 0 : index
      %c0_19 = arith.constant 0 : index
      %51 = vector.load %arg4[%c0_18, %c0_19] : memref<8x128xf32, #tpu.memory_space<vmem>>, vector<8x128xf32>
      tpu.vector_store %arg4[%c0_18, %c0_19], %50 {strides = array<i32>} : memref<8x128xf32, #tpu.memory_space<vmem>>, vector<8x128xf32>,
    } else {
    }
    %45 = arith.extui %41 : i1 to i32
    %c0_i32_14 = arith.constant 0 : i32
    %46 = arith.cmpi ne, %45, %c0_i32_14 : i32
    scf.if %46 {
      %c16_i32 = arith.constant 16 : i32
      %47 = arith.muli %40, %c16_i32 : i32
      %48 = tpu.iota {dimensions = array<i32: 0>} : vector<16x128xi32>
      %49 = vector.broadcast %47 : i32 to vector<16x128xi32>
      %50 = arith.addi %48, %49 : vector<16x128xi32>
      %c16_i32_15 = arith.constant 16 : i32
      %51 = vector.broadcast %c16_i32_15 : i32 to vector<16x128xi32>
      %52 = arith.cmpi slt, %50, %51 : vector<16x128xi32>
      %c0_16 = arith.constant 0 : index
      %c0_17 = arith.constant 0 : index
      %53 = vector.load %arg4[%c0_16, %c0_17] : memref<8x128xf32, #tpu.memory_space<vmem>>, vector<8x128xf32>
      %cst_18 = arith.constant 0.000000e+00 : f32
      %54 = vector.broadcast %cst_18 : f32 to vector<16x128xf32>
      %55 = arith.select %52, %38, %54 : vector<16x128xi1>, vector<16x128xf32>
      %56 = vector.shape_cast %55 : vector<16x128xf32> to vector<2x8x128xf32>
      %cst_19 = arith.constant dense<0.000000e+00> : vector<8x128xf32>
      %57 = vector.multi_reduction <add>, %56, %cst_19 [0] : vector<2x8x128xf32> to vector<8x128xf32>
      %58 = arith.addf %53, %57 : vector<8x128xf32>
      %c0_20 = arith.constant 0 : index
      %c0_21 = arith.constant 0 : index
      %59 = vector.load %arg4[%c0_20, %c0_21] : memref<8x128xf32, #tpu.memory_space<vmem>>, vector<8x128xf32>
      tpu.vector_store %arg4[%c0_20, %c0_21], %58 {strides = array<i32>} : memref<8x128xf32, #tpu.memory_space<vmem>>, vector<8x128xf32>,
    } else {
    }
    return
  }
  func.func @transform_0(%arg0: i32, %arg1: i32) -> (i32, i32) {
    %c1_i32 = arith.constant 1 : i32
    %0 = arith.muli %arg0, %c1_i32 : i32
    %1 = arith.addi %0, %arg1 : i32
    %c0_i32 = arith.constant 0 : i32
    %2 = arith.minsi %1, %c0_i32 : i32
    %c0_i32_0 = arith.constant 0 : i32
    %c0_i32_1 = arith.constant 0 : i32
    return %2, %c0_i32_0 : i32, i32
  }
  func.func @transform_1(%arg0: i32, %arg1: i32) -> (i32, i32) {
    %c1_i32 = arith.constant 1 : i32
    %0 = arith.muli %arg0, %c1_i32 : i32
    %1 = arith.addi %0, %arg1 : i32
    %c0_i32 = arith.constant 0 : i32
    %2 = arith.minsi %1, %c0_i32 : i32
    %c0_i32_0 = arith.constant 0 : i32
    %c0_i32_1 = arith.constant 0 : i32
    return %2, %c0_i32_0 : i32, i32
  }
  func.func @transform_2(%arg0: i32, %arg1: i32) -> (i32, i32) {
    %c0_i32 = arith.constant 0 : i32
    %c0_i32_0 = arith.constant 0 : i32
    return %arg0, %c0_i32 : i32, i32
  }
}

</mosaic_0001>

<llo_original>
// kernel: tpu_custom_call.1
$region0: #{tpu_custom_call.1}
  #allocation0 [shape = 'u32[]', space=smem, size = 0x4, offset = 0x4, fixed_abs, tag = 'smem constant byte address 0x4 - core index']
  #allocation1 [shape = 'u32[144,128]{1,0:T(1,128)}', space=vmem, size = 0x12000, scoped, tag = 'internal scratch']
  %s0 = inlined_call_operand.hbm [shape: f32[16,128], index: 0, kind: input, shape index: {}]
  %s1 = inlined_call_operand.hbm [shape: f32[16,128], index: 1, kind: input, shape index: {}]
  %s2 = inlined_call_operand.hbm [shape: f32[8,128], index: 2, kind: output, shape index: {}]
  %s3 = sld [smem:[#allocation0]]
  $region38: #{tpu_custom_call.1} parent=0
    _
  %s5 = ssub.s32 1, %s3
  %s6 = scalar_select 0, %s5, %s3
  $region1: #{tpu_custom_call.1} parent=0
    #allocation2 [shape = 'u8[8192]{0}', space=vmem, size = 0x2000, scoped, tag = 'input window, operand 0, single buffered']
    #allocation3 [shape = 's32[1]{0}', space=sflag, size = 0x4, scoped, tag = 'scoped memory for tpu_custom_call.1']
    #allocation4 [shape = 's32[1]{0}', space=sflag, size = 0x4, scoped, tag = 'scoped memory for tpu_custom_call.1']
    #allocation5 [shape = 'u8[8192]{0}', space=vmem, size = 0x2000, scoped, tag = 'input window, operand 1, single buffered']
    #allocation6 [shape = 's32[1]{0}', space=sflag, size = 0x4, scoped, tag = 'scoped memory for tpu_custom_call.1']
    #allocation7 [shape = 'u8[4096]{0}', space=vmem, size = 0x1000, scoped, tag = 'output window, operand 0, single buffered']
    %7 = vsyncpa [#allocation3], 0
    %8 = vsyncpa [#allocation6], 0
    %9 = vsyncpa [#allocation4], 0
    // Predicated region
    $region2: #{tpu_custom_call.1} parent=1 // pred_check
      _
    $region3: #{tpu_custom_call.1} parent=1 // pred_check_branch
      %11 = sbr.rel (0) target = $region5
    $region4: #{tpu_custom_call.1} parent=1 // pred_region
      %s12 = sadd.s32 0, 0
      %p13 = scmp.lt.s32.totalorder %s12, 0
      %s14 = scalar_select %p13, %s12, 0
      %s15 = smul.u32 2, %s14
      %s17 = ssub.s32 256, 256
      %18 = vsyncadd [#allocation3], %s17
      %s19 = smul.addr %s15, 128
      %s20 = scalar_lea.hbm %s0, %s19
      %s21 = sshll.u32 [#allocation2], 4
      %s22 = int_to_ptr.vmem [resolvable:$true] %s21
      %27 = dma.hbm_to_vmem [thread:$0]  %s20, 256, %s22, [#allocation3], 128, 128, 8
    $region5: #{tpu_custom_call.1} parent=1 // pred_fallthru
      _
    // Predicated region
    $region6: #{tpu_custom_call.1} parent=1 // pred_check
      _
    $region7: #{tpu_custom_call.1} parent=1 // pred_check_branch
      %29 = sbr.rel (0) target = $region9
    $region8: #{tpu_custom_call.1} parent=1 // pred_region
      %s30 = sadd.s32 0, 0
      %p31 = scmp.lt.s32.totalorder %s30, 0
      %s32 = scalar_select %p31, %s30, 0
      %s33 = smul.u32 2, %s32
      %s35 = ssub.s32 256, 256
      %36 = vsyncadd [#allocation6], %s35
      %s37 = smul.addr %s33, 128
      %s38 = scalar_lea.hbm %s1, %s37
      %s39 = sshll.u32 [#allocation5], 4
      %s40 = int_to_ptr.vmem [resolvable:$true] %s39
      %45 = dma.hbm_to_vmem [thread:$0]  %s38, 256, %s40, [#allocation6], 128, 128, 8
    $region9: #{tpu_custom_call.1} parent=1 // pred_fallthru
      _
    // Predicated region
    $region10: #{tpu_custom_call.1} parent=1 // pred_check
      _
    $region11: #{tpu_custom_call.1} parent=1 // pred_check_branch
      %47 = sbr.rel (0) target = $region13
    $region12: #{tpu_custom_call.1} parent=1 // pred_region
      %48 = dma.done [#allocation3], 256
    $region13: #{tpu_custom_call.1} parent=1 // pred_fallthru
      _
    // Predicated region
    $region14: #{tpu_custom_call.1} parent=1 // pred_check
      _
    $region15: #{tpu_custom_call.1} parent=1 // pred_check_branch
      %50 = sbr.rel (0) target = $region17
    $region16: #{tpu_custom_call.1} parent=1 // pred_region
      %51 = dma.done [#allocation6], 256
    $region17: #{tpu_custom_call.1} parent=1 // pred_fallthru
      _
    %s52 = sadd.s32 0, 0
    %p53 = scmp.lt.s32.totalorder %s52, 0
    %s54 = scalar_select %p53, %s52, 0
    %s55 = smul.u32 2, %s54
    %s56 = sadd.s32 0, 0
    %p57 = scmp.lt.s32.totalorder %s56, 0
    %s58 = scalar_select %p57, %s56, 0
    %s59 = smul.u32 2, %s58
    %p60 = scmp.eq.s32.totalorder 0, 0
    // Predicated region
    $region18: #{tpu_custom_call.1} parent=1 // pred_check
      %p61 = pneg %p60
    $region19: #{tpu_custom_call.1} parent=1 // pred_check_branch
      %63 = sbr.rel (%p61) target = $region21
    $region20: #{tpu_custom_call.1} parent=1 // pred_region
      %64 = vst [vmem:[#allocation7] sm:$0xff] 0.0
    $region21: #{tpu_custom_call.1} parent=1 // pred_fallthru
      _
    %v65 = vld [vmem:[#allocation2] sm:$0xff]
    %v66 = vld [vmem:[#allocation2 + $0x8] sm:$0xff]
    %v67 = vld [vmem:[#allocation5] sm:$0xff]
    %v68 = vld [vmem:[#allocation5 + $0x8] sm:$0xff]
    %v69 = vand.u32 2147483647, %v65
    %v70 = vand.u32 2147483647, %v66
    %v71 = vsub.f32 0.0, %v69
    %v72 = vsub.f32 0.0, %v70
    %v73 = vmul.f32 %v71, 1.442695
    %v74 = vpow.pop %v73
    %v75 = vmul.f32 %v72, 1.442695
    %v76 = vpow.pop %v75
    %v77 = vadd.f32 %v74, 1.0
    %v78 = vadd.f32 %v76, 1.0
    %v79 = vrcp.pop %v77
    %v80 = vrcp.pop %v78
    %v81 = vmul.f32 %v77, %v79
    %v82 = vmul.f32 %v78, %v80
    %v83 = vsub.f32 2.0, %v81
    %v84 = vsub.f32 2.0, %v82
    %v85 = vmul.f32 %v79, %v83
    %v86 = vmul.f32 %v80, %v84
    %vm87 = vcmp.ge.f32.partialorder %v65, 0.0
    %vm88 = vcmp.ge.f32.partialorder %v66, 0.0
    %v89 = vsel %vm87, 1.0, %v74
    %v90 = vsel %vm88, 1.0, %v76
    %v91 = vmul.f32 %v89, %v85
    %v92 = vmul.f32 %v90, %v86
    %v93 = vadd.f32 %v91, %v67
    %v94 = vadd.f32 %v92, %v68
    %v95 = vmul.f32 %v91, 2.0
    %v96 = vmul.f32 %v92, 2.0
    %v97 = vmul.f32 %v95, %v67
    %v98 = vmul.f32 %v96, %v68
    %v99 = vsub.f32 %v93, %v97
    %v100 = vsub.f32 %v94, %v98
    %v101 = vmul.f32 %v99, %v99
    %v102 = vmul.f32 %v100, %v100
    %v103 = vmul.f32 %v67, -0.5
    %v104 = vmul.f32 %v68, -0.5
    %v105 = vadd.f32 %v103, 0.75
    %v106 = vadd.f32 %v104, 0.75
    %v107 = vmax.f32 %v65, 0.0
    %v108 = vmax.f32 %v66, 0.0
    %v109 = vmul.f32 %v65, %v67
    %v110 = vmul.f32 %v66, %v68
    %v111 = vsub.f32 %v107, %v109
    %v112 = vsub.f32 %v108, %v110
    %v113 = vadd.f32 %v74, 1.0
    %v114 = vlog2.pop %v113
    %v115 = vmul.f32 %v114, 0.6931472
    %v116 = vmul.f32 -0.5, %v74
    %v117 = vadd.f32 %v116, 1.0
    %v118 = vmul.f32 %v117, %v74
    %v119 = vand.u32 2147483647, %v74
    %vm120 = vcmp.lt.f32.partialorder %v119, 0.0004427343
    %v121 = vsel %vm120, %v118, %v115
    %v122 = vadd.f32 %v76, 1.0
    %v123 = vlog2.pop %v122
    %v124 = vmul.f32 %v123, 0.6931472
    %v125 = vmul.f32 -0.5, %v76
    %v126 = vadd.f32 %v125, 1.0
    %v127 = vmul.f32 %v126, %v76
    %v128 = vand.u32 2147483647, %v76
    %vm129 = vcmp.lt.f32.partialorder %v128, 0.0004427343
    %v130 = vsel %vm129, %v127, %v124
    %v131 = vadd.f32 %v111, %v121
    %v132 = vadd.f32 %v112, %v130
    %v133 = vmul.f32 %v131, %v105
    %v134 = vmul.f32 %v132, %v106
    %v135 = vmul.f32 %v133, %v101
    %v136 = vmul.f32 %v134, %v102
    %s137 = sadd.s32 0, 0
    %p138 = scmp.ge.s32.totalorder %s137, 0
    %p139 = scmp.lt.s32.totalorder %s137, 0
    // Predicated region
    $region22: #{tpu_custom_call.1} parent=1 // pred_check
      %p140 = pneg %p139
    $region23: #{tpu_custom_call.1} parent=1 // pred_check_branch
      %142 = sbr.rel (%p140) target = $region25
    $region24: #{tpu_custom_call.1} parent=1 // pred_region
      %v143 = vld [vmem:[#allocation7] sm:$0xff]
      %v144 = vadd.f32 %v135, %v136
      %v145 = vadd.f32 %v143, %v144
      %146 = vst [vmem:[#allocation7] sm:$0xff] %v145
    $region25: #{tpu_custom_call.1} parent=1 // pred_fallthru
      _
    // Predicated region
    $region26: #{tpu_custom_call.1} parent=1 // pred_check
      %p147 = pneg %p138
    $region27: #{tpu_custom_call.1} parent=1 // pred_check_branch
      %149 = sbr.rel (%p147) target = $region29
    $region28: #{tpu_custom_call.1} parent=1 // pred_region
      %s150 = smul.u32 %s137, 16
      %v151 = vlaneseq
      %v152 = vshrl.u32 %v151, 7
      %v153 = vadd.s32 %v152, 8
      %v154 = vstv %s150
      %v155 = vadd.s32 %v152, %v154
      %v156 = vadd.s32 %v153, %v154
      %vm157 = vcmp.lt.s32.totalorder %v155, 16
      %vm158 = vcmp.lt.s32.totalorder %v156, 16
      %v159 = vld [vmem:[#allocation7] sm:$0xff]
      %v160 = vsel %vm157, %v135, 0.0
      %v161 = vsel %vm158, %v136, 0.0
      %v162 = vadd.f32 %v160, %v161
      %v163 = vadd.f32 %v159, %v162
      %164 = vst [vmem:[#allocation7] sm:$0xff] %v163
    $region29: #{tpu_custom_call.1} parent=1 // pred_fallthru
      _
    // Predicated region
    $region30: #{tpu_custom_call.1} parent=1 // pred_check
      _
    $region31: #{tpu_custom_call.1} parent=1 // pred_check_branch
      %166 = sbr.rel (0) target = $region33
    $region32: #{tpu_custom_call.1} parent=1 // pred_region
      %s168 = ssub.s32 128, 128
      %169 = vsyncadd [#allocation4], %s168
      %s171 = sshll.u32 [#allocation7], 4
      %s172 = int_to_ptr.vmem [resolvable:$true] %s171
      %174 = dma.vmem_to_hbm [thread:$0]  %s172, 128, %s2, [#allocation4]
    $region33: #{tpu_custom_call.1} parent=1 // pred_fallthru
      _
    // Predicated region
    $region34: #{tpu_custom_call.1} parent=1 // pred_check
      _
    $region35: #{tpu_custom_call.1} parent=1 // pred_check_branch
      %176 = sbr.rel (0) target = $region37
    $region36: #{tpu_custom_call.1} parent=1 // pred_region
      %177 = dma.done [#allocation4], 128
    $region37: #{tpu_custom_call.1} parent=1 // pred_fallthru
      _
    %178 = vsyncpa [#allocation3], 1
    %179 = vsyncpa [#allocation6], 1
    %180 = vsyncpa [#allocation4], 1

</llo_original>
